<compile_context>
chip_gen: v7x
topology: tpu7x:2x2x1
jax: 0.10.0
libtpu: 0.0.40
codegen_flags: <defaults>
</compile_context>

<pallas_src>
import jax
import jax.numpy as jnp
import numpy as np
from jax.experimental import pallas as pl
from jax.experimental.pallas import tpu as pltpu


def _sigmoid(v):
    # same naive formula in kernel and reference for close numerical parity
    return 1.0 / (1.0 + jnp.exp(-v))


def _column_masks(H, W):
    """(2, H*W) f32 masks: row 0 = (w != 0), row 1 = (w != W-1)."""
    col = np.arange(H * W) % W
    return jnp.asarray(
        np.stack([(col != 0), (col != W - 1)]).astype(np.float32))


# ---------------------------------------------------------------------------
# In-kernel conv3x3 (zero pad=1) on a flattened (Cin, H*W) planar stack.
# Weights: VMEM ref (9, Cout, Cin) with BN scale folded in.  Bias: (Cout, 1).
# Returns the (Cout, H*W) f32 result with bias added.
# ---------------------------------------------------------------------------
def _conv3x3_taps(xf, w_ref, b_ref, cout, H, W, m_first, m_last):
    cin, HW = xf.shape
    acc = jnp.zeros((cout, HW), jnp.float32)
    for kh in range(3):
        for kw in range(3):
            dh, dw = kh - 1, kw - 1
            sh = dh * W + dw           # static flat shift
            if sh == 0:
                win = xf
            elif sh > 0:
                win = jnp.concatenate(
                    [xf[:, sh:], jnp.zeros((cin, sh), jnp.float32)], axis=1)
            else:
                win = jnp.concatenate(
                    [jnp.zeros((cin, -sh), jnp.float32), xf[:, :sh]], axis=1)
            # zero out columns that wrapped across a row boundary
            if dw == 1:
                win = win * m_last
            elif dw == -1:
                win = win * m_first
            acc = acc + jnp.dot(w_ref[kh * 3 + kw], win,
                                preferred_element_type=jnp.float32)
    return acc + b_ref[...]


# ---------------------------------------------------------------------------
# Fused conv3x3 + BN + (optional) GLU kernel (jointConv / upBlock conv)
# ---------------------------------------------------------------------------
def _make_conv_block_kernel(n_const, cin, cout, H, W, glu):
    HW = H * W

    def kernel(*refs):
        it = iter(refs)
        c_ref = next(it) if n_const else None      # SMEM (N, n_const)
        x_ref = next(it)                           # VMEM (1, cin, HW)
        mask_ref = next(it)                        # VMEM (2, HW)
        w_ref = next(it)                           # VMEM (9, cout, n_const+cin)
        b_ref = next(it)                           # VMEM (cout, 1)
        o_ref = next(it)                           # VMEM (1, cout_post, HW)

        m = mask_ref[...]
        m_first, m_last = m[0:1], m[1:2]

        xf = x_ref[0].astype(jnp.float32)          # (cin, HW)
        if n_const:
            n = pl.program_id(0)
            consts = [jnp.full((1, HW), c_ref[n, i], jnp.float32)
                      for i in range(n_const)]
            xf = jnp.concatenate(consts + [xf], axis=0)

        acc = _conv3x3_taps(xf, w_ref, b_ref, cout, H, W, m_first, m_last)
        if glu:
            half = cout // 2
            out = acc[:half] * _sigmoid(acc[half:])
        else:
            out = acc
        o_ref[0] = out.astype(o_ref.dtype)

    return kernel


def conv_block(x_flat, weight, bn_scale, bn_bias, *, H, W, glu, c_const=None):
    """conv3x3(pad=1, bias=False) + folded BN + optional GLU.

    x_flat : (N, Cin, H*W) flattened NCHW activations
    weight : (Cout, n_const + Cin, 3, 3); the first n_const input channels are
             the spatially-constant c_code planes (torch.cat((c_code, h_code), 1))
    """
    N, cin, HW = x_flat.shape
    assert HW == H * W
    cout = weight.shape[0]
    n_const = 0 if c_const is None else c_const.shape[1]
    cin_total = n_const + cin
    assert weight.shape == (cout, cin_total, 3, 3)
    cout_post = cout // 2 if glu else cout

    # fold BN scale into the (bias-free) conv weights; keep BN bias separate
    w_f = weight.astype(jnp.float32) * bn_scale.astype(jnp.float32)[:, None, None, None]
    w9 = jnp.transpose(w_f, (2, 3, 0, 1)).reshape(9, cout, cin_total)
    bias = bn_bias.astype(jnp.float32).reshape(cout, 1)
    masks = _column_masks(H, W)

    kernel = _make_conv_block_kernel(n_const, cin, cout, H, W, glu)

    inputs, in_specs = [], []
    if n_const:
        inputs.append(c_const.astype(jnp.float32))
        in_specs.append(pl.BlockSpec(memory_space=pltpu.MemorySpace.SMEM))
    inputs += [x_flat, masks, w9, bias]
    in_specs += [
        pl.BlockSpec((1, cin, HW), lambda n: (n, 0, 0)),
        pl.BlockSpec((2, HW), lambda n: (0, 0)),
        pl.BlockSpec((9, cout, cin_total), lambda n: (0, 0, 0)),
        pl.BlockSpec((cout, 1), lambda n: (0, 0)),
    ]

    return pl.pallas_call(
        kernel,
        out_shape=jax.ShapeDtypeStruct((N, cout_post, HW), x_flat.dtype),
        grid_spec=pltpu.PrefetchScalarGridSpec(
            num_scalar_prefetch=0,
            grid=(N,),
            in_specs=in_specs,
            out_specs=pl.BlockSpec((1, cout_post, HW), lambda n: (n, 0, 0)),
        ),
        compiler_params=pltpu.CompilerParams(
            dimension_semantics=("parallel",),
            vmem_limit_bytes=48 * 1024 * 1024),
    )(*inputs)


# ---------------------------------------------------------------------------
# Fused ResBlock kernel: GLU(BN(conv1(x))) -> BN(conv2(.)) + x, single call
# ---------------------------------------------------------------------------
def _make_res_block_kernel(C, H, W):
    HW = H * W

    def kernel(x_ref, mask_ref, w1_ref, b1_ref, w2_ref, b2_ref, o_ref):
        m = mask_ref[...]
        m_first, m_last = m[0:1], m[1:2]

        xf = x_ref[0].astype(jnp.float32)                      # (C, HW)
        a1 = _conv3x3_taps(xf, w1_ref, b1_ref, 2 * C, H, W, m_first, m_last)
        y = a1[:C] * _sigmoid(a1[C:])                          # GLU -> (C, HW)
        a2 = _conv3x3_taps(y, w2_ref, b2_ref, C, H, W, m_first, m_last)
        o_ref[0] = (a2 + xf).astype(o_ref.dtype)               # skip add

    return kernel


def res_block(x_flat, w1, s1, b1, w2, s2, b2, *, H, W):
    N, C, HW = x_flat.shape
    assert HW == H * W
    assert w1.shape == (2 * C, C, 3, 3) and w2.shape == (C, C, 3, 3)

    w1f = w1.astype(jnp.float32) * s1.astype(jnp.float32)[:, None, None, None]
    w2f = w2.astype(jnp.float32) * s2.astype(jnp.float32)[:, None, None, None]
    w9_1 = jnp.transpose(w1f, (2, 3, 0, 1)).reshape(9, 2 * C, C)
    w9_2 = jnp.transpose(w2f, (2, 3, 0, 1)).reshape(9, C, C)
    bias1 = b1.astype(jnp.float32).reshape(2 * C, 1)
    bias2 = b2.astype(jnp.float32).reshape(C, 1)
    masks = _column_masks(H, W)

    kernel = _make_res_block_kernel(C, H, W)

    return pl.pallas_call(
        kernel,
        out_shape=jax.ShapeDtypeStruct((N, C, HW), x_flat.dtype),
        grid_spec=pltpu.PrefetchScalarGridSpec(
            num_scalar_prefetch=0,
            grid=(N,),
            in_specs=[
                pl.BlockSpec((1, C, HW), lambda n: (n, 0, 0)),
                pl.BlockSpec((2, HW), lambda n: (0, 0)),
                pl.BlockSpec((9, 2 * C, C), lambda n: (0, 0, 0)),
                pl.BlockSpec((2 * C, 1), lambda n: (0, 0)),
                pl.BlockSpec((9, C, C), lambda n: (0, 0, 0)),
                pl.BlockSpec((C, 1), lambda n: (0, 0)),
            ],
            out_specs=pl.BlockSpec((1, C, HW), lambda n: (n, 0, 0)),
        ),
        compiler_params=pltpu.CompilerParams(
            dimension_semantics=("parallel",),
            vmem_limit_bytes=48 * 1024 * 1024),
    )(x_flat, masks, w9_1, bias1, w9_2, bias2)


# ---------------------------------------------------------------------------
# Nearest-neighbour x2 upsample (wrapper-side)
# ---------------------------------------------------------------------------
def upsample_nearest_2x(x):
    # TODO(synk): fuse into the upBlock conv kernel via phase decomposition to
    # avoid one HBM round-trip of the 4x-larger activation.
    N, C, H, W = x.shape
    x = jnp.broadcast_to(x[:, :, :, None, :, None], (N, C, H, 2, W, 2))
    return x.reshape(N, C, 2 * H, 2 * W)


# ---------------------------------------------------------------------------
# NEXT_STAGE_G forward (Pallas path); activations kept flat between layers
# ---------------------------------------------------------------------------
def next_stage_g_forward(h_code, c_code, params):
    N, ngf, s, _ = h_code.shape
    x = h_code.reshape(N, ngf, s * s)

    jw, js, jb = params["joint"]
    x = conv_block(x, jw, js, jb, H=s, W=s, glu=True, c_const=c_code)

    for (w1, s1, b1, w2, s2, b2) in params["res"]:
        x = res_block(x, w1, s1, b1, w2, s2, b2, H=s, W=s)

    uw, us, ub = params["up"]
    x_up = upsample_nearest_2x(x.reshape(N, ngf, s, s))
    x_up = x_up.reshape(N, ngf, 4 * s * s)
    out = conv_block(x_up, uw, us, ub, H=2 * s, W=2 * s, glu=True)
    return out.reshape(N, ngf // 2, 2 * s, 2 * s)


# ---------------------------------------------------------------------------
# Pure-JAX reference (matches PyTorch eval-mode semantics)
# ---------------------------------------------------------------------------
def _conv3x3_ref(x, w):
    return jax.lax.conv_general_dilated(
        x, w, window_strides=(1, 1), padding=((1, 1), (1, 1)),
        dimension_numbers=("NCHW", "OIHW", "NCHW"),
        precision=jax.lax.Precision.HIGHEST)


def _bn_ref(x, scale, bias):
    return x * scale[None, :, None, None] + bias[None, :, None, None]


def _glu_ref(x):
    c = x.shape[1] // 2
    return x[:, :c] * _sigmoid(x[:, c:])


def next_stage_g_reference(h_code, c_code, params):
    N, nef = c_code.shape
    s = h_code.shape[2]
    c_plane = jnp.broadcast_to(c_code[:, :, None, None], (N, nef, s, s))
    x = jnp.concatenate([c_plane, h_code], axis=1)
    jw, js, jb = params["joint"]
    x = _glu_ref(_bn_ref(_conv3x3_ref(x, jw), js, jb))
    for (w1, s1, b1, w2, s2, b2) in params["res"]:
        y = _glu_ref(_bn_ref(_conv3x3_ref(x, w1), s1, b1))
        x = _bn_ref(_conv3x3_ref(y, w2), s2, b2) + x
    uw, us, ub = params["up"]
    x = upsample_nearest_2x(x)
    return _glu_ref(_bn_ref(_conv3x3_ref(x, uw), us, ub))


# ---------------------------------------------------------------------------
# Demo / correctness check
# ---------------------------------------------------------------------------
if __name__ == "__main__":
    key = jax.random.PRNGKey(0)
    N, ngf, nef, s, num_residual = 2, 4, 4, 16, 2

    kit = iter(jax.random.split(key, 16))

    def conv_w(k, cout, cin):
        bound = 1.0 / np.sqrt(cin * 9)
        return jax.random.uniform(k, (cout, cin, 3, 3), jnp.float32, -bound, bound)

    def bn_folded(k, c, eps=1e-5):
        k1, k2, k3, k4 = jax.random.split(k, 4)
        gamma = jax.random.uniform(k1, (c,), jnp.float32, 0.5, 1.5)
        beta = jax.random.uniform(k2, (c,), jnp.float32, -0.5, 0.5)
        mean = 0.1 * jax.random.normal(k3, (c,), jnp.float32)
        var = jax.random.uniform(k4, (c,), jnp.float32, 0.5, 1.5)
        scale = gamma / jnp.sqrt(var + eps)
        bias = beta - mean * scale
        return scale, bias

    h_code = jax.random.normal(next(kit), (N, ngf, s, s), jnp.float32)
    c_code = jax.random.normal(next(kit), (N, nef), jnp.float32)

    params = {
        "joint": (conv_w(next(kit), 2 * ngf, ngf + nef),
                  *bn_folded(next(kit), 2 * ngf)),
        "res": [],
        "up": (conv_w(next(kit), 2 * (ngf // 2), ngf),
               *bn_folded(next(kit), 2 * (ngf // 2))),
    }
    for _ in range(num_residual):
        w1 = conv_w(next(kit), 2 * ngf, ngf)
        s1, b1 = bn_folded(next(kit), 2 * ngf)
        w2 = conv_w(next(kit), ngf, ngf)
        s2, b2 = bn_folded(next(kit), ngf)
        params["res"].append((w1, s1, b1, w2, s2, b2))

    out = next_stage_g_forward(h_code, c_code, params)
    out = jax.block_until_ready(out)

    ref = jax.block_until_ready(next_stage_g_reference(h_code, c_code, params))

    assert out.shape == (N, ngf // 2, 2 * s, 2 * s)
    np.testing.assert_allclose(np.asarray(out), np.asarray(ref),
                               atol=2e-3, rtol=2e-3)
    print("KERNEL_OK")
</pallas_src>

<mosaic_0001>
module attributes {stable_mosaic.version = 11 : i64} {
  func.func @kernel(%arg0: i32, %arg1: memref<2x4xf32, #tpu.memory_space<smem>>, %arg2: memref<1x4x256xf32, #tpu.memory_space<vmem>>, %arg3: memref<2x256xf32, #tpu.memory_space<vmem>>, %arg4: memref<9x8x8xf32, #tpu.memory_space<vmem>>, %arg5: memref<8x1xf32, #tpu.memory_space<vmem>>, %arg6: memref<1x4x256xf32, #tpu.memory_space<vmem>>) attributes {dimension_semantics = [#tpu.dimension_semantics<parallel>], iteration_bounds = array<i64: 2>, scalar_prefetch = 0 : i64, scratch_operands = 0 : i64, tpu.core_type = #tpu.core_type<tc>, window_params = [{transform_indices = @transform_0, window_bounds = array<i64: 2, 4>}, {transform_indices = @transform_1, window_bounds = array<i64: 1, 4, 256>}, {pipeline_mode = #tpu.pipeline_mode<synchronous>, transform_indices = @transform_2, window_bounds = array<i64: 2, 256>}, {pipeline_mode = #tpu.pipeline_mode<synchronous>, transform_indices = @transform_3, window_bounds = array<i64: 9, 8, 8>}, {pipeline_mode = #tpu.pipeline_mode<synchronous>, transform_indices = @transform_4, window_bounds = array<i64: 8, 1>}, {transform_indices = @transform_5, window_bounds = array<i64: 1, 4, 256>}]} {
    %c0 = arith.constant 0 : index
    %c0_0 = arith.constant 0 : index
    %0 = vector.load %arg3[%c0, %c0_0] : memref<2x256xf32, #tpu.memory_space<vmem>>, vector<2x256xf32>
    %1 = vector.extract_strided_slice %0 {offsets = [0, 0], sizes = [1, 256], strides = [1, 1]} : vector<2x256xf32> to vector<1x256xf32>
    %2 = vector.extract_strided_slice %0 {offsets = [1, 0], sizes = [1, 256], strides = [1, 1]} : vector<2x256xf32> to vector<1x256xf32>
    %c0_1 = arith.constant 0 : index
    %c0_2 = arith.constant 0 : index
    %c0_3 = arith.constant 0 : index
    %3 = vector.load %arg2[%c0_1, %c0_2, %c0_3] : memref<1x4x256xf32, #tpu.memory_space<vmem>>, vector<1x4x256xf32>
    %4 = vector.shape_cast %3 : vector<1x4x256xf32> to vector<4x256xf32>
    %5 = arith.index_cast %arg0 : i32 to index
    %c0_4 = arith.constant 0 : index
    %6 = memref.load %arg1[%5, %c0_4] : memref<2x4xf32, #tpu.memory_space<smem>>
    %7 = vector.broadcast %6 : f32 to vector<1x256xf32>
    %8 = arith.index_cast %arg0 : i32 to index
    %c1 = arith.constant 1 : index
    %9 = memref.load %arg1[%8, %c1] : memref<2x4xf32, #tpu.memory_space<smem>>
    %10 = vector.broadcast %9 : f32 to vector<1x256xf32>
    %11 = arith.index_cast %arg0 : i32 to index
    %c2 = arith.constant 2 : index
    %12 = memref.load %arg1[%11, %c2] : memref<2x4xf32, #tpu.memory_space<smem>>
    %13 = vector.broadcast %12 : f32 to vector<1x256xf32>
    %14 = arith.index_cast %arg0 : i32 to index
    %c3 = arith.constant 3 : index
    %15 = memref.load %arg1[%14, %c3] : memref<2x4xf32, #tpu.memory_space<smem>>
    %16 = vector.broadcast %15 : f32 to vector<1x256xf32>
    %17 = tpu.concatenate %7, %10, %13, %16, %4 in 0 : vector<1x256xf32>, vector<1x256xf32>, vector<1x256xf32>, vector<1x256xf32>, vector<4x256xf32> -> vector<8x256xf32>
    %cst = arith.constant 0.000000e+00 : f32
    %18 = vector.broadcast %cst : f32 to vector<8x256xf32>
    %cst_5 = arith.constant 0.000000e+00 : f32
    %19 = vector.broadcast %cst_5 : f32 to vector<8x17xf32>
    %20 = vector.extract_strided_slice %17 {offsets = [0, 0], sizes = [8, 239], strides = [1, 1]} : vector<8x256xf32> to vector<8x239xf32>
    %21 = tpu.concatenate %19, %20 in 1 : vector<8x17xf32>, vector<8x239xf32> -> vector<8x256xf32>
    %22 = vector.broadcast %1 : vector<1x256xf32> to vector<8x256xf32>
    %23 = arith.mulf %21, %22 : vector<8x256xf32>
    %c0_6 = arith.constant 0 : index
    %c0_7 = arith.constant 0 : index
    %c0_8 = arith.constant 0 : index
    %24 = vector.load %arg4[%c0_6, %c0_7, %c0_8] : memref<9x8x8xf32, #tpu.memory_space<vmem>>, vector<1x8x8xf32>
    %25 = vector.shape_cast %24 : vector<1x8x8xf32> to vector<8x8xf32>
    %cst_9 = arith.constant dense<0.000000e+00> : vector<8x256xf32>
    %26 = tpu.matmul %25, %23, %cst_9 {dimension_numbers = #tpu.dot_dimension_numbers<[1], [0], [0], [1], [0, 0, 1, 1], [], []>} : vector<8x8xf32>, vector<8x256xf32>, vector<8x256xf32> -> vector<8x256xf32>
    %27 = arith.addf %18, %26 : vector<8x256xf32>
    %cst_10 = arith.constant 0.000000e+00 : f32
    %28 = vector.broadcast %cst_10 : f32 to vector<8x16xf32>
    %29 = vector.extract_strided_slice %17 {offsets = [0, 0], sizes = [8, 240], strides = [1, 1]} : vector<8x256xf32> to vector<8x240xf32>
    %30 = tpu.concatenate %28, %29 in 1 : vector<8x16xf32>, vector<8x240xf32> -> vector<8x256xf32>
    %c1_11 = arith.constant 1 : index
    %c0_12 = arith.constant 0 : index
    %c0_13 = arith.constant 0 : index
    %31 = vector.load %arg4[%c1_11, %c0_12, %c0_13] : memref<9x8x8xf32, #tpu.memory_space<vmem>>, vector<1x8x8xf32>
    %32 = vector.shape_cast %31 : vector<1x8x8xf32> to vector<8x8xf32>
    %cst_14 = arith.constant dense<0.000000e+00> : vector<8x256xf32>
    %33 = tpu.matmul %32, %30, %cst_14 {dimension_numbers = #tpu.dot_dimension_numbers<[1], [0], [0], [1], [0, 0, 1, 1], [], []>} : vector<8x8xf32>, vector<8x256xf32>, vector<8x256xf32> -> vector<8x256xf32>
    %34 = arith.addf %27, %33 : vector<8x256xf32>
    %cst_15 = arith.constant 0.000000e+00 : f32
    %35 = vector.broadcast %cst_15 : f32 to vector<8x15xf32>
    %36 = vector.extract_strided_slice %17 {offsets = [0, 0], sizes = [8, 241], strides = [1, 1]} : vector<8x256xf32> to vector<8x241xf32>
    %37 = tpu.concatenate %35, %36 in 1 : vector<8x15xf32>, vector<8x241xf32> -> vector<8x256xf32>
    %38 = vector.broadcast %2 : vector<1x256xf32> to vector<8x256xf32>
    %39 = arith.mulf %37, %38 : vector<8x256xf32>
    %c2_16 = arith.constant 2 : index
    %c0_17 = arith.constant 0 : index
    %c0_18 = arith.constant 0 : index
    %40 = vector.load %arg4[%c2_16, %c0_17, %c0_18] : memref<9x8x8xf32, #tpu.memory_space<vmem>>, vector<1x8x8xf32>
    %41 = vector.shape_cast %40 : vector<1x8x8xf32> to vector<8x8xf32>
    %cst_19 = arith.constant dense<0.000000e+00> : vector<8x256xf32>
    %42 = tpu.matmul %41, %39, %cst_19 {dimension_numbers = #tpu.dot_dimension_numbers<[1], [0], [0], [1], [0, 0, 1, 1], [], []>} : vector<8x8xf32>, vector<8x256xf32>, vector<8x256xf32> -> vector<8x256xf32>
    %43 = arith.addf %34, %42 : vector<8x256xf32>
    %cst_20 = arith.constant 0.000000e+00 : f32
    %44 = vector.broadcast %cst_20 : f32 to vector<8x1xf32>
    %45 = vector.extract_strided_slice %17 {offsets = [0, 0], sizes = [8, 255], strides = [1, 1]} : vector<8x256xf32> to vector<8x255xf32>
    %46 = tpu.concatenate %44, %45 in 1 : vector<8x1xf32>, vector<8x255xf32> -> vector<8x256xf32>
    %47 = vector.broadcast %1 : vector<1x256xf32> to vector<8x256xf32>
    %48 = arith.mulf %46, %47 : vector<8x256xf32>
    %c3_21 = arith.constant 3 : index
    %c0_22 = arith.constant 0 : index
    %c0_23 = arith.constant 0 : index
    %49 = vector.load %arg4[%c3_21, %c0_22, %c0_23] : memref<9x8x8xf32, #tpu.memory_space<vmem>>, vector<1x8x8xf32>
    %50 = vector.shape_cast %49 : vector<1x8x8xf32> to vector<8x8xf32>
    %cst_24 = arith.constant dense<0.000000e+00> : vector<8x256xf32>
    %51 = tpu.matmul %50, %48, %cst_24 {dimension_numbers = #tpu.dot_dimension_numbers<[1], [0], [0], [1], [0, 0, 1, 1], [], []>} : vector<8x8xf32>, vector<8x256xf32>, vector<8x256xf32> -> vector<8x256xf32>
    %52 = arith.addf %43, %51 : vector<8x256xf32>
    %c4 = arith.constant 4 : index
    %c0_25 = arith.constant 0 : index
    %c0_26 = arith.constant 0 : index
    %53 = vector.load %arg4[%c4, %c0_25, %c0_26] : memref<9x8x8xf32, #tpu.memory_space<vmem>>, vector<1x8x8xf32>
    %54 = vector.shape_cast %53 : vector<1x8x8xf32> to vector<8x8xf32>
    %cst_27 = arith.constant dense<0.000000e+00> : vector<8x256xf32>
    %55 = tpu.matmul %54, %17, %cst_27 {dimension_numbers = #tpu.dot_dimension_numbers<[1], [0], [0], [1], [0, 0, 1, 1], [], []>} : vector<8x8xf32>, vector<8x256xf32>, vector<8x256xf32> -> vector<8x256xf32>
    %56 = arith.addf %52, %55 : vector<8x256xf32>
    %57 = vector.extract_strided_slice %17 {offsets = [0, 1], sizes = [8, 255], strides = [1, 1]} : vector<8x256xf32> to vector<8x255xf32>
    %cst_28 = arith.constant 0.000000e+00 : f32
    %58 = vector.broadcast %cst_28 : f32 to vector<8x1xf32>
    %59 = tpu.concatenate %57, %58 in 1 : vector<8x255xf32>, vector<8x1xf32> -> vector<8x256xf32>
    %60 = vector.broadcast %2 : vector<1x256xf32> to vector<8x256xf32>
    %61 = arith.mulf %59, %60 : vector<8x256xf32>
    %c5 = arith.constant 5 : index
    %c0_29 = arith.constant 0 : index
    %c0_30 = arith.constant 0 : index
    %62 = vector.load %arg4[%c5, %c0_29, %c0_30] : memref<9x8x8xf32, #tpu.memory_space<vmem>>, vector<1x8x8xf32>
    %63 = vector.shape_cast %62 : vector<1x8x8xf32> to vector<8x8xf32>
    %cst_31 = arith.constant dense<0.000000e+00> : vector<8x256xf32>
    %64 = tpu.matmul %63, %61, %cst_31 {dimension_numbers = #tpu.dot_dimension_numbers<[1], [0], [0], [1], [0, 0, 1, 1], [], []>} : vector<8x8xf32>, vector<8x256xf32>, vector<8x256xf32> -> vector<8x256xf32>
    %65 = arith.addf %56, %64 : vector<8x256xf32>
    %66 = vector.extract_strided_slice %17 {offsets = [0, 15], sizes = [8, 241], strides = [1, 1]} : vector<8x256xf32> to vector<8x241xf32>
    %cst_32 = arith.constant 0.000000e+00 : f32
    %67 = vector.broadcast %cst_32 : f32 to vector<8x15xf32>
    %68 = tpu.concatenate %66, %67 in 1 : vector<8x241xf32>, vector<8x15xf32> -> vector<8x256xf32>
    %69 = vector.broadcast %1 : vector<1x256xf32> to vector<8x256xf32>
    %70 = arith.mulf %68, %69 : vector<8x256xf32>
    %c6 = arith.constant 6 : index
    %c0_33 = arith.constant 0 : index
    %c0_34 = arith.constant 0 : index
    %71 = vector.load %arg4[%c6, %c0_33, %c0_34] : memref<9x8x8xf32, #tpu.memory_space<vmem>>, vector<1x8x8xf32>
    %72 = vector.shape_cast %71 : vector<1x8x8xf32> to vector<8x8xf32>
    %cst_35 = arith.constant dense<0.000000e+00> : vector<8x256xf32>
    %73 = tpu.matmul %72, %70, %cst_35 {dimension_numbers = #tpu.dot_dimension_numbers<[1], [0], [0], [1], [0, 0, 1, 1], [], []>} : vector<8x8xf32>, vector<8x256xf32>, vector<8x256xf32> -> vector<8x256xf32>
    %74 = arith.addf %65, %73 : vector<8x256xf32>
    %75 = vector.extract_strided_slice %17 {offsets = [0, 16], sizes = [8, 240], strides = [1, 1]} : vector<8x256xf32> to vector<8x240xf32>
    %cst_36 = arith.constant 0.000000e+00 : f32
    %76 = vector.broadcast %cst_36 : f32 to vector<8x16xf32>
    %77 = tpu.concatenate %75, %76 in 1 : vector<8x240xf32>, vector<8x16xf32> -> vector<8x256xf32>
    %c7 = arith.constant 7 : index
    %c0_37 = arith.constant 0 : index
    %c0_38 = arith.constant 0 : index
    %78 = vector.load %arg4[%c7, %c0_37, %c0_38] : memref<9x8x8xf32, #tpu.memory_space<vmem>>, vector<1x8x8xf32>
    %79 = vector.shape_cast %78 : vector<1x8x8xf32> to vector<8x8xf32>
    %cst_39 = arith.constant dense<0.000000e+00> : vector<8x256xf32>
    %80 = tpu.matmul %79, %77, %cst_39 {dimension_numbers = #tpu.dot_dimension_numbers<[1], [0], [0], [1], [0, 0, 1, 1], [], []>} : vector<8x8xf32>, vector<8x256xf32>, vector<8x256xf32> -> vector<8x256xf32>
    %81 = arith.addf %74, %80 : vector<8x256xf32>
    %82 = vector.extract_strided_slice %17 {offsets = [0, 17], sizes = [8, 239], strides = [1, 1]} : vector<8x256xf32> to vector<8x239xf32>
    %cst_40 = arith.constant 0.000000e+00 : f32
    %83 = vector.broadcast %cst_40 : f32 to vector<8x17xf32>
    %84 = tpu.concatenate %82, %83 in 1 : vector<8x239xf32>, vector<8x17xf32> -> vector<8x256xf32>
    %85 = vector.broadcast %2 : vector<1x256xf32> to vector<8x256xf32>
    %86 = arith.mulf %84, %85 : vector<8x256xf32>
    %c8 = arith.constant 8 : index
    %c0_41 = arith.constant 0 : index
    %c0_42 = arith.constant 0 : index
    %87 = vector.load %arg4[%c8, %c0_41, %c0_42] : memref<9x8x8xf32, #tpu.memory_space<vmem>>, vector<1x8x8xf32>
    %88 = vector.shape_cast %87 : vector<1x8x8xf32> to vector<8x8xf32>
    %cst_43 = arith.constant dense<0.000000e+00> : vector<8x256xf32>
    %89 = tpu.matmul %88, %86, %cst_43 {dimension_numbers = #tpu.dot_dimension_numbers<[1], [0], [0], [1], [0, 0, 1, 1], [], []>} : vector<8x8xf32>, vector<8x256xf32>, vector<8x256xf32> -> vector<8x256xf32>
    %90 = arith.addf %81, %89 : vector<8x256xf32>
    %c0_44 = arith.constant 0 : index
    %c0_45 = arith.constant 0 : index
    %91 = vector.load %arg5[%c0_44, %c0_45] : memref<8x1xf32, #tpu.memory_space<vmem>>, vector<8x1xf32>
    %92 = vector.broadcast %91 : vector<8x1xf32> to vector<8x256xf32>
    %93 = arith.addf %90, %92 : vector<8x256xf32>
    %94 = vector.extract_strided_slice %93 {offsets = [0, 0], sizes = [4, 256], strides = [1, 1]} : vector<8x256xf32> to vector<4x256xf32>
    %95 = vector.extract_strided_slice %93 {offsets = [4, 0], sizes = [4, 256], strides = [1, 1]} : vector<8x256xf32> to vector<4x256xf32>
    %cst_46 = arith.constant 0.000000e+00 : f32
    %96 = vector.broadcast %cst_46 : f32 to vector<4x256xf32>
    %97 = arith.subf %96, %95 : vector<4x256xf32>
    %98 = math.exp %97 : vector<4x256xf32>
    %cst_47 = arith.constant 1.000000e+00 : f32
    %99 = vector.broadcast %cst_47 : f32 to vector<4x256xf32>
    %100 = arith.addf %99, %98 : vector<4x256xf32>
    %cst_48 = arith.constant 1.000000e+00 : f32
    %101 = vector.broadcast %cst_48 : f32 to vector<4x256xf32>
    %102 = arith.divf %101, %100 : vector<4x256xf32>
    %103 = arith.mulf %94, %102 : vector<4x256xf32>
    %c0_49 = arith.constant 0 : index
    %c0_50 = arith.constant 0 : index
    %c0_51 = arith.constant 0 : index
    %104 = vector.load %arg6[%c0_49, %c0_50, %c0_51] : memref<1x4x256xf32, #tpu.memory_space<vmem>>, vector<1x4x256xf32>
    %105 = vector.shape_cast %104 : vector<1x4x256xf32> to vector<4x256xf32>
    %106 = vector.shape_cast %103 : vector<4x256xf32> to vector<1x4x256xf32>
    tpu.vector_store %arg6[%c0_49, %c0_50, %c0_51], %106 {strides = array<i32>} : memref<1x4x256xf32, #tpu.memory_space<vmem>>, vector<1x4x256xf32>,
    return
  }
  func.func @transform_0(%arg0: i32) -> (i32, i32) {
    %c0_i32 = arith.constant 0 : i32
    %c0_i32_0 = arith.constant 0 : i32
    %c0_i32_1 = arith.constant 0 : i32
    return %c0_i32, %c0_i32_0 : i32, i32
  }
  func.func @transform_1(%arg0: i32) -> (i32, i32, i32) {
    %c0_i32 = arith.constant 0 : i32
    %c0_i32_0 = arith.constant 0 : i32
    %c0_i32_1 = arith.constant 0 : i32
    return %arg0, %c0_i32, %c0_i32_0 : i32, i32, i32
  }
  func.func @transform_2(%arg0: i32) -> (i32, i32) {
    %c0_i32 = arith.constant 0 : i32
    %c0_i32_0 = arith.constant 0 : i32
    %c0_i32_1 = arith.constant 0 : i32
    return %c0_i32, %c0_i32_0 : i32, i32
  }
  func.func @transform_3(%arg0: i32) -> (i32, i32, i32) {
    %c0_i32 = arith.constant 0 : i32
    %c0_i32_0 = arith.constant 0 : i32
    %c0_i32_1 = arith.constant 0 : i32
    %c0_i32_2 = arith.constant 0 : i32
    return %c0_i32, %c0_i32_0, %c0_i32_1 : i32, i32, i32
  }
  func.func @transform_4(%arg0: i32) -> (i32, i32) {
    %c0_i32 = arith.constant 0 : i32
    %c0_i32_0 = arith.constant 0 : i32
    %c0_i32_1 = arith.constant 0 : i32
    return %c0_i32, %c0_i32_0 : i32, i32
  }
  func.func @transform_5(%arg0: i32) -> (i32, i32, i32) {
    %c0_i32 = arith.constant 0 : i32
    %c0_i32_0 = arith.constant 0 : i32
    %c0_i32_1 = arith.constant 0 : i32
    return %arg0, %c0_i32, %c0_i32_0 : i32, i32, i32
  }
}

</mosaic_0001>

<llo_original>
// kernel: tpu_custom_call.1
$region0: #{tpu_custom_call.1}
  #allocation0 [shape = 'u32[]', space=smem, size = 0x4, offset = 0x4, fixed_abs, tag = 'smem constant byte address 0x4 - core index']
  #allocation1 [shape = 'u32[144,128]{1,0:T(1,128)}', space=vmem, size = 0x12000, scoped, tag = 'internal scratch']
  %s0 = inlined_call_operand.vmem [shape: f32[2,4], index: 0, kind: input, shape index: {}]
  %s1 = inlined_call_operand.vmem [shape: f32[2,4,256], index: 1, kind: input, shape index: {}]
  %s2 = inlined_call_operand.vmem [shape: f32[2,256], index: 2, kind: input, shape index: {}]
  %s3 = inlined_call_operand.vmem [shape: f32[9,8,8], index: 3, kind: input, shape index: {}]
  %s4 = inlined_call_operand.vmem [shape: f32[8,1], index: 4, kind: input, shape index: {}]
  %s5 = inlined_call_operand.hbm [shape: f32[2,4,256], index: 5, kind: output, shape index: {}]
  %s6 = sld [smem:[#allocation0]]
  $region57: #{tpu_custom_call.1} parent=0
    _
  %s8 = ssub.s32 1, %s6
  %s9 = scalar_select 0, %s8, %s6
  $region1: #{tpu_custom_call.1} parent=0
    #allocation2 [shape = 'u8[1024]{0}', space=smem, size = 0x400, scoped, tag = 'input window, operand 0, single buffered']
    #allocation3 [shape = 's32[2]{0}', space=sflag, size = 0x8, scoped, tag = 'scoped memory for tpu_custom_call.1']
    #allocation4 [shape = 's32[2]{0}', space=sflag, size = 0x8, scoped, tag = 'scoped memory for tpu_custom_call.1']
    #allocation5 [shape = 'u8[8192]{0}', space=vmem, size = 0x2000, scoped, tag = 'output window, operand 0']
    %10 = vsyncpa [#allocation4], 0
    %11 = vsyncpa [#allocation3], 0
    %s12 = scalar_lea.sflag [#allocation3], 1
    %13 = vsyncpa %s12, 0
    loop: start=0, step=1, limit=4
    $region2: #{tpu_custom_call.1} parent=1 // loop_pre_header
      _
    $region3: #{tpu_custom_call.1} parent=1 // loop_header
      %s15 = sphi 0, %s19
      %p16 = scmp.ge.s32.totalorder %s15, 4
      %s23 = sphi 0, %s23
      %s25 = sphi 0, %s23
      %s26 = sphi 0, %s25
      %s40 = sphi 0, %s26
      %s46 = sphi 0, %s48
      %s49 = sphi 0, %s46
      %s50 = sphi 0, %s49
      %s66 = sphi 0, %s50
      %s70 = sphi 0, %s70
      %s72 = sphi 0, %s70
      %s73 = sphi 0, %s72
      %s87 = sphi 0, %s73
      %s91 = sphi 0, %s91
      %s93 = sphi 0, %s91
      %s94 = sphi 0, %s93
      %s108 = sphi 0, %s94
      %s112 = sphi 0, %s112
      %s114 = sphi 0, %s112
      %s115 = sphi 0, %s114
      %s129 = sphi 0, %s115
      %s135 = sphi 0, %s137
      %s138 = sphi 0, %s135
      %s139 = sphi 0, %s138
      %s155 = sphi 0, %s139
    $region4: #{tpu_custom_call.1} parent=1 // loop_header_branch
      %18 = sbr.rel (%p16) target = $region8
    $region5: #{tpu_custom_call.1} parent=1 // loop_body
      %s20 = ssub.s32 %s15, 1
      %s21 = ssub.s32 %s15, 2
      %s22 = sadd.s32 %s15, 1
      %s24 = sadd.s32 %s23, 1
      %p27 = scmp.eq.s32.totalorder %s15, 1
      %p28 = scmp.ne.s32.totalorder %s23, %s25
      %p29 = scmp.eq.s32.totalorder %s15, 0
      %p30 = por %p28, %p29
      %p31 = scmp.ne.s32.totalorder %s23, %s25
      %p32 = scmp.eq.s32.totalorder %s20, 1
      %p33 = por %p31, %p32
      %p34 = scmp.ne.s32.totalorder %s25, %s26
      %p35 = scmp.eq.s32.totalorder %s20, 0
      %p36 = por %p34, %p35
      %p37 = scmp.ne.s32.totalorder %s25, %s26
      %p38 = scmp.eq.s32.totalorder %s21, 1
      %p39 = por %p37, %p38
      %p41 = scmp.ne.s32.totalorder %s26, %s40
      %p42 = scmp.eq.s32.totalorder %s21, 0
      %p43 = por %p41, %p42
      %s44 = ssub.s32 %s15, %s22
      %p45 = scmp.eq.s32.totalorder %s44, 0
      %s47 = sadd.s32 %s46, 1
      %s48 = scalar_select %p45, %s46, %s47
      %p51 = pneg %p45
      %p52 = scmp.eq.s32.totalorder %s15, 1
      %p53 = por %p51, %p52
      %p54 = scmp.ne.s32.totalorder %s46, %s49
      %p55 = scmp.eq.s32.totalorder %s15, 0
      %p56 = por %p54, %p55
      %p57 = scmp.ne.s32.totalorder %s46, %s49
      %p58 = scmp.eq.s32.totalorder %s20, 1
      %p59 = por %p57, %p58
      %p60 = scmp.ne.s32.totalorder %s49, %s50
      %p61 = scmp.eq.s32.totalorder %s20, 0
      %p62 = por %p60, %p61
      %p63 = scmp.ne.s32.totalorder %s49, %s50
      %p64 = scmp.eq.s32.totalorder %s21, 1
      %p65 = por %p63, %p64
      %p67 = scmp.ne.s32.totalorder %s50, %s66
      %p68 = scmp.eq.s32.totalorder %s21, 0
      %p69 = por %p67, %p68
      %s71 = sadd.s32 %s70, 1
      %p74 = scmp.eq.s32.totalorder %s15, 1
      %p75 = scmp.ne.s32.totalorder %s70, %s72
      %p76 = scmp.eq.s32.totalorder %s15, 0
      %p77 = por %p75, %p76
      %p78 = scmp.ne.s32.totalorder %s70, %s72
      %p79 = scmp.eq.s32.totalorder %s20, 1
      %p80 = por %p78, %p79
      %p81 = scmp.ne.s32.totalorder %s72, %s73
      %p82 = scmp.eq.s32.totalorder %s20, 0
      %p83 = por %p81, %p82
      %p84 = scmp.ne.s32.totalorder %s72, %s73
      %p85 = scmp.eq.s32.totalorder %s21, 1
      %p86 = por %p84, %p85
      %p88 = scmp.ne.s32.totalorder %s73, %s87
      %p89 = scmp.eq.s32.totalorder %s21, 0
      %p90 = por %p88, %p89
      %s92 = sadd.s32 %s91, 1
      %p95 = scmp.eq.s32.totalorder %s15, 1
      %p96 = scmp.ne.s32.totalorder %s91, %s93
      %p97 = scmp.eq.s32.totalorder %s15, 0
      %p98 = por %p96, %p97
      %p99 = scmp.ne.s32.totalorder %s91, %s93
      %p100 = scmp.eq.s32.totalorder %s20, 1
      %p101 = por %p99, %p100
      %p102 = scmp.ne.s32.totalorder %s93, %s94
      %p103 = scmp.eq.s32.totalorder %s20, 0
      %p104 = por %p102, %p103
      %p105 = scmp.ne.s32.totalorder %s93, %s94
      %p106 = scmp.eq.s32.totalorder %s21, 1
      %p107 = por %p105, %p106
      %p109 = scmp.ne.s32.totalorder %s94, %s108
      %p110 = scmp.eq.s32.totalorder %s21, 0
      %p111 = por %p109, %p110
      %s113 = sadd.s32 %s112, 1
      %p116 = scmp.eq.s32.totalorder %s15, 1
      %p117 = scmp.ne.s32.totalorder %s112, %s114
      %p118 = scmp.eq.s32.totalorder %s15, 0
      %p119 = por %p117, %p118
      %p120 = scmp.ne.s32.totalorder %s112, %s114
      %p121 = scmp.eq.s32.totalorder %s20, 1
      %p122 = por %p120, %p121
      %p123 = scmp.ne.s32.totalorder %s114, %s115
      %p124 = scmp.eq.s32.totalorder %s20, 0
      %p125 = por %p123, %p124
      %p126 = scmp.ne.s32.totalorder %s114, %s115
      %p127 = scmp.eq.s32.totalorder %s21, 1
      %p128 = por %p126, %p127
      %p130 = scmp.ne.s32.totalorder %s115, %s129
      %p131 = scmp.eq.s32.totalorder %s21, 0
      %p132 = por %p130, %p131
      %s133 = ssub.s32 %s15, %s22
      %p134 = scmp.eq.s32.totalorder %s133, 0
      %s136 = sadd.s32 %s135, 1
      %s137 = scalar_select %p134, %s135, %s136
      %p140 = pneg %p134
      %p141 = scmp.eq.s32.totalorder %s15, 1
      %p142 = por %p140, %p141
      %p143 = scmp.ne.s32.totalorder %s135, %s138
      %p144 = scmp.eq.s32.totalorder %s15, 0
      %p145 = por %p143, %p144
      %p146 = scmp.ne.s32.totalorder %s135, %s138
      %p147 = scmp.eq.s32.totalorder %s20, 1
      %p148 = por %p146, %p147
      %p149 = scmp.ne.s32.totalorder %s138, %s139
      %p150 = scmp.eq.s32.totalorder %s20, 0
      %p151 = por %p149, %p150
      %p152 = scmp.ne.s32.totalorder %s138, %s139
      %p153 = scmp.eq.s32.totalorder %s21, 1
      %p154 = por %p152, %p153
      %p156 = scmp.ne.s32.totalorder %s139, %s155
      %p157 = scmp.eq.s32.totalorder %s21, 0
      %p158 = por %p156, %p157
      %p159 = scmp.le.s32.totalorder 1, %s15
      %p160 = scmp.lt.s32.totalorder %s15, 3
      %p161 = pnand %p159, %p160
      %p162 = pneg %p161
      // Predicated region
      $region9: #{tpu_custom_call.1} parent=5 // pred_check
        _
      $region10: #{tpu_custom_call.1} parent=5 // pred_check_branch
        %164 = sbr.rel (%p161) target = $region12
      $region11: #{tpu_custom_call.1} parent=5 // pred_region
        %s165 = ssub.s32 %s15, 1
        // Predicated region
        $region13: #{tpu_custom_call.1} parent=11 // pred_check
          %p166 = pneg %p36
        $region14: #{tpu_custom_call.1} parent=11 // pred_check_branch
          %168 = sbr.rel (%p166) target = $region16
        $region15: #{tpu_custom_call.1} parent=11 // pred_region
          %s170 = ssub.s32 32, 32
          %171 = vsyncadd [#allocation4], %s170
          %s173 = sshll.u32 %s0, 4
          %s174 = int_to_ptr.vmem [resolvable:$true] %s173
          %176 = dma.vmem_to_smem %s174, 32, [#allocation2], [#allocation4]
        $region16: #{tpu_custom_call.1} parent=11 // pred_fallthru
          _
        // Predicated region
        $region17: #{tpu_custom_call.1} parent=11 // pred_check
          %p177 = pneg %p83
        $region18: #{tpu_custom_call.1} parent=11 // pred_check_branch
          %179 = sbr.rel (%p177) target = $region20
        $region19: #{tpu_custom_call.1} parent=11 // pred_region
          _
        $region20: #{tpu_custom_call.1} parent=11 // pred_fallthru
          _
        // Predicated region
        $region21: #{tpu_custom_call.1} parent=11 // pred_check
          %p180 = pneg %p104
        $region22: #{tpu_custom_call.1} parent=11 // pred_check_branch
          %182 = sbr.rel (%p180) target = $region24
        $region23: #{tpu_custom_call.1} parent=11 // pred_region
          _
        $region24: #{tpu_custom_call.1} parent=11 // pred_fallthru
          _
        // Predicated region
        $region25: #{tpu_custom_call.1} parent=11 // pred_check
          %p183 = pneg %p125
        $region26: #{tpu_custom_call.1} parent=11 // pred_check_branch
          %185 = sbr.rel (%p183) target = $region28
        $region27: #{tpu_custom_call.1} parent=11 // pred_region
          _
        $region28: #{tpu_custom_call.1} parent=11 // pred_fallthru
          _
      $region12: #{tpu_custom_call.1} parent=5 // pred_fallthru
        _
      %p186 = scmp.lt.s32.totalorder %s15, 2
      // Predicated region
      $region29: #{tpu_custom_call.1} parent=5 // pred_check
        %p187 = pneg %p186
      $region30: #{tpu_custom_call.1} parent=5 // pred_check_branch
        %189 = sbr.rel (%p187) target = $region32
      $region31: #{tpu_custom_call.1} parent=5 // pred_region
        // Predicated region
        $region33: #{tpu_custom_call.1} parent=31 // pred_check
          %p190 = pneg %p56
        $region34: #{tpu_custom_call.1} parent=31 // pred_check_branch
          %192 = sbr.rel (%p190) target = $region36
        $region35: #{tpu_custom_call.1} parent=31 // pred_region
          %p193 = scmp.lt.s32.totalorder %s15, 1
          %s194 = scalar_select %p193, %s15, 1
          %s195 = smul.addr %s194, 2
          %s196 = smul.addr %s195, 4
          %s197 = scalar_lea.vmem %s1, %s196
        $region36: #{tpu_custom_call.1} parent=31 // pred_fallthru
          _
      $region32: #{tpu_custom_call.1} parent=5 // pred_fallthru
        _
      %p198 = scmp.le.s32.totalorder 1, %s15
      %p199 = scmp.lt.s32.totalorder %s15, 3
      %p200 = pnand %p198, %p199
      %p201 = pneg %p200
      // Predicated region
      $region37: #{tpu_custom_call.1} parent=5 // pred_check
        _
      $region38: #{tpu_custom_call.1} parent=5 // pred_check_branch
        %203 = sbr.rel (%p200) target = $region40
      $region39: #{tpu_custom_call.1} parent=5 // pred_region
        %s204 = ssub.s32 %s15, 1
        // Predicated region
        $region41: #{tpu_custom_call.1} parent=39 // pred_check
          %p205 = pneg %p36
        $region42: #{tpu_custom_call.1} parent=39 // pred_check_branch
          %207 = sbr.rel (%p205) target = $region44
        $region43: #{tpu_custom_call.1} parent=39 // pred_region
          %208 = dma.done [#allocation4], 32
        $region44: #{tpu_custom_call.1} parent=39 // pred_fallthru
          _
        %209 = sfence
        %p210 = pneg %p36
        %p211 = pneg %p33
        %p212 = scmp.lt.s32.totalorder %s20, 1
        %s213 = scalar_select %p212, %s20, 1
        %s214 = smul.addr %s213, 2
        %s215 = smul.addr %s214, 4
        %s216 = scalar_lea.vmem %s1, %s215
        %p217 = pneg %p62
        %p218 = pneg %p59
        %p219 = pneg %p83
        %p220 = pneg %p80
        %p221 = pneg %p104
        %p222 = pneg %p101
        %p223 = pneg %p125
        %p224 = pneg %p122
        %p225 = pneg %p151
        %p226 = pneg %p148
        %s227 = sand.u32 %s138, 1
        %s228 = scalar_lea.sflag [#allocation3], %s227
        %s229 = sand.u32 %s138, 1
        %s230 = smul.addr %s229, 8
        %s231 = scalar_lea.vmem [#allocation5], %s230
        %p232 = scmp.lt.s32.totalorder %s20, 1
        %s233 = scalar_select %p232, %s20, 1
        %s234 = smul.addr %s233, 2
        %s235 = smul.addr %s234, 4
        %s236 = scalar_lea.vmem %s1, %s235
        %v237 = vld [vmem:[%s2] sm:$0xf]
        %v238 = vld [vmem:[%s236] sm:$0xff]
        %s239 = smul.u32 %s20, 128
        %s240 = sld [smem:[#allocation2 + %s239]]
        %v241 = vstv %s240
        %s242 = sadd.s32 %s239, 1
        %s243 = sld [smem:[#allocation2 + %s242]]
        %v244 = vstv %s243
        %s245 = sadd.s32 %s239, 2
        %s246 = sld [smem:[#allocation2 + %s245]]
        %v247 = vstv %s246
        %s248 = sadd.s32 %s239, 3
        %s249 = sld [smem:[#allocation2 + %s248]]
        %v250 = vstv %s249
        %v252 = vcombine.low %v238, %v238
        %vm254 = vcmask 1040384
        %v255 = vsel %vm254, %v241, %v244
        %vm256 = vcmask 1041408
        %v257 = vsel %vm256, %v255, %v247
        %vm258 = vcmask 1042432
        %v259 = vsel %vm258, %v257, %v250
        %vm260 = vcmask 1043456
        %v261 = vsel %vm260, %v259, %v252
        %v262 = vsel %vm260, %v259, %v238
        %265 = vrot.lane.b32.xlu0 %v261, 17
        %v266 = vpop.permute.xlu0 %265
        %267 = vrot.lane.b32.xlu0 %v262, 17
        %v268 = vpop.permute.xlu0 %267
        %vm269 = vcmask 138240
        %v270 = vsel %vm269, %v266, %v268
        %v273 = vsel %vm269, 0.0, %v266
        %v275 = vlaneseq
        %v276 = vshrl.u32 %v275, 7
        %v277 = vsub.s32 0, %v276
        %v278 = vrot.slane %v237, %v277
        %v279 = vlaneseq
        %v280 = vshrl.u32 %v279, 7
        %v281 = vsub.s32 2, %v280
        %v282 = vrot.slane %v237, %v281
        %v285 = vlaneseq
        %v286 = vshrl.u32 %v285, 7
        %v287 = vsub.s32 0, %v286
        %v288 = vrot.slane %v278, %v287
        %v289 = vlaneseq
        %v290 = vshrl.u32 %v289, 7
        %v291 = vsub.s32 0, %v290
        %v292 = vrot.slane %v282, %v291
        %v293 = vmul.f32 %v273, %v288
        %v294 = vmul.f32 %v270, %v292
        %v295 = vld [vmem:[%s3] sm:$0xff]
        %296 = vrot.lane.b32.xlu0 %v261, 16
        %v297 = vpop.permute.xlu0 %296
        %298 = vrot.lane.b32.xlu0 %v262, 16
        %v299 = vpop.permute.xlu0 %298
        %vm300 = vcmask 130048
        %v301 = vsel %vm300, %v297, %v299
        %v304 = vsel %vm300, 0.0, %v297
        %s305 = scalar_lea.vmem %s3, 8
        %v306 = vld [vmem:[%s305] sm:$0xff]
        %vm307 = vcmask 64512
        %v309 = vsel %vm307, %v306, 0
        %311 = vmatprep.subr.mxu0 %v301
        %312 = vmatpush1.msra.mxu0 %v304
        %313 = vmatprep.subr.mxu0 0.0
        %314 = vmatpush1.msra.mxu0 0.0
        %315 = vmatprep.subr.mxu0 0.0
        %316 = vmatpush1.msra.mxu0 0.0
        %317 = vmatprep.subr.mxu0 0.0
        %318 = vmatpush1.msra.mxu0 0.0
        %319 = vmatprep.subr.mxu0 0.0
        %320 = vmatpush1.msra.mxu0 0.0
        %321 = vmatprep.subr.mxu0 0.0
        %322 = vmatpush1.msra.mxu0 0.0
        %323 = vmatprep.subr.mxu0 0.0
        %324 = vmatpush1.msra.mxu0 0.0
        %325 = vmatprep.subr.mxu0 0.0
        %326 = vmatpush1.msra.mxu0 0.0
        %327 = vmatprep.subr.mxu0 0.0
        %328 = vmatpush1.msra.mxu0 0.0
        %329 = vmatprep.subr.mxu0 0.0
        %330 = vmatpush1.msra.mxu0 0.0
        %331 = vmatprep.subr.mxu0 0.0
        %332 = vmatpush1.msra.mxu0 0.0
        %333 = vmatprep.subr.mxu0 0.0
        %334 = vmatpush1.msra.mxu0 0.0
        %335 = vmatprep.subr.mxu0 0.0
        %336 = vmatpush1.msra.mxu0 0.0
        %337 = vmatprep.subr.mxu0 0.0
        %338 = vmatpush1.msra.mxu0 0.0
        %339 = vmatprep.subr.mxu0 0.0
        %340 = vmatpush1.msra.mxu0 0.0
        %341 = vmatprep.subr.mxu0 0.0
        %342 = vmatpush1.msra.mxu0 0.0
        %343 = vmatprep.subr.mxu0 0.0
        %344 = vmatpush1.msra.mxu0 0.0
        %345 = vmatprep.subr.mxu0 0.0
        %346 = vmatpush1.msra.mxu0 0.0
        %347 = vmatprep.subr.mxu0 0.0
        %348 = vmatpush1.msra.mxu0 0.0
        %349 = vmatprep.subr.mxu0 0.0
        %350 = vmatpush1.msra.mxu0 0.0
        %351 = vmatprep.subr.mxu0 0.0
        %352 = vmatpush1.msra.mxu0 0.0
        %353 = vmatprep.subr.mxu0 0.0
        %354 = vmatpush1.msra.mxu0 0.0
        %355 = vmatprep.subr.mxu0 0.0
        %356 = vmatpush1.msra.mxu0 0.0
        %357 = vmatprep.subr.mxu0 0.0
        %358 = vmatpush1.msra.mxu0 0.0
        %359 = vmatprep.subr.mxu0 0.0
        %360 = vmatpush1.msra.mxu0 0.0
        %361 = vmatprep.subr.mxu0 0.0
        %362 = vmatpush1.msra.mxu0 0.0
        %363 = vmatprep.subr.mxu0 0.0
        %364 = vmatpush1.msra.mxu0 0.0
        %365 = vmatprep.subr.mxu0 0.0
        %366 = vmatpush1.msra.mxu0 0.0
        %367 = vmatprep.subr.mxu0 0.0
        %368 = vmatpush1.msra.mxu0 0.0
        %369 = vmatprep.subr.mxu0 0.0
        %370 = vmatpush1.msra.mxu0 0.0
        %371 = vmatprep.subr.mxu0 0.0
        %372 = vmatpush1.msra.mxu0 0.0
        %373 = vmatprep.subr.mxu0 0.0
        %374 = vmatpush1.msra.mxu0 0.0
        %375 = vmatprep.mubr.f32.mxu0 0.0
        %376 = vmatmul.mubr.f32.gmra.mrb[0].mxu0 %v309
        %v377 = vpop.f32.mrb[0].mxu0
        %v378 = vadd.f32 0.0, %v377
        %v379 = vpop.f32.mrb[0].mxu0
        %v380 = vadd.f32 0.0, %v379
        %381 = vdwg.mxu0
        %v383 = vsel %vm307, %v295, 0
        %385 = vmatprep.subr.mxu0 %v294
        %386 = vmatpush1.msra.mxu0 %v293
        %387 = vmatprep.subr.mxu0 0.0
        %388 = vmatpush1.msra.mxu0 0.0
        %389 = vmatprep.subr.mxu0 0.0
        %390 = vmatpush1.msra.mxu0 0.0
        %391 = vmatprep.subr.mxu0 0.0
        %392 = vmatpush1.msra.mxu0 0.0
        %393 = vmatprep.subr.mxu0 0.0
        %394 = vmatpush1.msra.mxu0 0.0
        %395 = vmatprep.subr.mxu0 0.0
        %396 = vmatpush1.msra.mxu0 0.0
        %397 = vmatprep.subr.mxu0 0.0
        %398 = vmatpush1.msra.mxu0 0.0
        %399 = vmatprep.subr.mxu0 0.0
        %400 = vmatpush1.msra.mxu0 0.0
        %401 = vmatprep.subr.mxu0 0.0
        %402 = vmatpush1.msra.mxu0 0.0
        %403 = vmatprep.subr.mxu0 0.0
        %404 = vmatpush1.msra.mxu0 0.0
        %405 = vmatprep.subr.mxu0 0.0
        %406 = vmatpush1.msra.mxu0 0.0
        %407 = vmatprep.subr.mxu0 0.0
        %408 = vmatpush1.msra.mxu0 0.0
        %409 = vmatprep.subr.mxu0 0.0
        %410 = vmatpush1.msra.mxu0 0.0
        %411 = vmatprep.subr.mxu0 0.0
        %412 = vmatpush1.msra.mxu0 0.0
        %413 = vmatprep.subr.mxu0 0.0
        %414 = vmatpush1.msra.mxu0 0.0
        %415 = vmatprep.subr.mxu0 0.0
        %416 = vmatpush1.msra.mxu0 0.0
        %417 = vmatprep.subr.mxu0 0.0
        %418 = vmatpush1.msra.mxu0 0.0
        %419 = vmatprep.subr.mxu0 0.0
        %420 = vmatpush1.msra.mxu0 0.0
        %421 = vmatprep.subr.mxu0 0.0
        %422 = vmatpush1.msra.mxu0 0.0
        %423 = vmatprep.subr.mxu0 0.0
        %424 = vmatpush1.msra.mxu0 0.0
        %425 = vmatprep.subr.mxu0 0.0
        %426 = vmatpush1.msra.mxu0 0.0
        %427 = vmatprep.subr.mxu0 0.0
        %428 = vmatpush1.msra.mxu0 0.0
        %429 = vmatprep.subr.mxu0 0.0
        %430 = vmatpush1.msra.mxu0 0.0
        %431 = vmatprep.subr.mxu0 0.0
        %432 = vmatpush1.msra.mxu0 0.0
        %433 = vmatprep.subr.mxu0 0.0
        %434 = vmatpush1.msra.mxu0 0.0
        %435 = vmatprep.subr.mxu0 0.0
        %436 = vmatpush1.msra.mxu0 0.0
        %437 = vmatprep.subr.mxu0 0.0
        %438 = vmatpush1.msra.mxu0 0.0
        %439 = vmatprep.subr.mxu0 0.0
        %440 = vmatpush1.msra.mxu0 0.0
        %441 = vmatprep.subr.mxu0 0.0
        %442 = vmatpush1.msra.mxu0 0.0
        %443 = vmatprep.subr.mxu0 0.0
        %444 = vmatpush1.msra.mxu0 0.0
        %445 = vmatprep.subr.mxu0 0.0
        %446 = vmatpush1.msra.mxu0 0.0
        %447 = vmatprep.subr.mxu0 0.0
        %448 = vmatpush1.msra.mxu0 0.0
        %449 = vmatprep.mubr.f32.mxu0 0.0
        %450 = vmatmul.mubr.f32.gmra.mrb[0].mxu0 %v383
        %v451 = vpop.f32.mrb[0].mxu0
        %v452 = vadd.f32 %v378, %v451
        %v453 = vpop.f32.mrb[0].mxu0
        %v454 = vadd.f32 %v380, %v453
        %455 = vdwg.mxu0
        %456 = vrot.lane.b32.xlu0 %v261, 15
        %v457 = vpop.permute.xlu0 %456
        %458 = vrot.lane.b32.xlu0 %v262, 15
        %v459 = vpop.permute.xlu0 %458
        %vm460 = vcmask 121856
        %v461 = vsel %vm460, %v457, %v459
        %v464 = vsel %vm460, 0.0, %v457
        %v465 = vlaneseq
        %v466 = vshrl.u32 %v465, 7
        %v467 = vsub.s32 1, %v466
        %v468 = vrot.slane %v237, %v467
        %v469 = vlaneseq
        %v470 = vshrl.u32 %v469, 7
        %v471 = vsub.s32 3, %v470
        %v472 = vrot.slane %v237, %v471
        %v475 = vlaneseq
        %v476 = vshrl.u32 %v475, 7
        %v477 = vsub.s32 1, %v476
        %v478 = vrot.slane %v468, %v477
        %v479 = vlaneseq
        %v480 = vshrl.u32 %v479, 7
        %v481 = vsub.s32 1, %v480
        %v482 = vrot.slane %v472, %v481
        %v483 = vmul.f32 %v464, %v478
        %v484 = vmul.f32 %v461, %v482
        %s485 = scalar_lea.vmem %s3, 16
        %v486 = vld [vmem:[%s485] sm:$0xff]
        %v488 = vsel %vm307, %v486, 0
        %490 = vmatprep.subr.mxu0 %v484
        %491 = vmatpush1.msra.mxu0 %v483
        %492 = vmatprep.subr.mxu0 0.0
        %493 = vmatpush1.msra.mxu0 0.0
        %494 = vmatprep.subr.mxu0 0.0
        %495 = vmatpush1.msra.mxu0 0.0
        %496 = vmatprep.subr.mxu0 0.0
        %497 = vmatpush1.msra.mxu0 0.0
        %498 = vmatprep.subr.mxu0 0.0
        %499 = vmatpush1.msra.mxu0 0.0
        %500 = vmatprep.subr.mxu0 0.0
        %501 = vmatpush1.msra.mxu0 0.0
        %502 = vmatprep.subr.mxu0 0.0
        %503 = vmatpush1.msra.mxu0 0.0
        %504 = vmatprep.subr.mxu0 0.0
        %505 = vmatpush1.msra.mxu0 0.0
        %506 = vmatprep.subr.mxu0 0.0
        %507 = vmatpush1.msra.mxu0 0.0
        %508 = vmatprep.subr.mxu0 0.0
        %509 = vmatpush1.msra.mxu0 0.0
        %510 = vmatprep.subr.mxu0 0.0
        %511 = vmatpush1.msra.mxu0 0.0
        %512 = vmatprep.subr.mxu0 0.0
        %513 = vmatpush1.msra.mxu0 0.0
        %514 = vmatprep.subr.mxu0 0.0
        %515 = vmatpush1.msra.mxu0 0.0
        %516 = vmatprep.subr.mxu0 0.0
        %517 = vmatpush1.msra.mxu0 0.0
        %518 = vmatprep.subr.mxu0 0.0
        %519 = vmatpush1.msra.mxu0 0.0
        %520 = vmatprep.subr.mxu0 0.0
        %521 = vmatpush1.msra.mxu0 0.0
        %522 = vmatprep.subr.mxu0 0.0
        %523 = vmatpush1.msra.mxu0 0.0
        %524 = vmatprep.subr.mxu0 0.0
        %525 = vmatpush1.msra.mxu0 0.0
        %526 = vmatprep.subr.mxu0 0.0
        %527 = vmatpush1.msra.mxu0 0.0
        %528 = vmatprep.subr.mxu0 0.0
        %529 = vmatpush1.msra.mxu0 0.0
        %530 = vmatprep.subr.mxu0 0.0
        %531 = vmatpush1.msra.mxu0 0.0
        %532 = vmatprep.subr.mxu0 0.0
        %533 = vmatpush1.msra.mxu0 0.0
        %534 = vmatprep.subr.mxu0 0.0
        %535 = vmatpush1.msra.mxu0 0.0
        %536 = vmatprep.subr.mxu0 0.0
        %537 = vmatpush1.msra.mxu0 0.0
        %538 = vmatprep.subr.mxu0 0.0
        %539 = vmatpush1.msra.mxu0 0.0
        %540 = vmatprep.subr.mxu0 0.0
        %541 = vmatpush1.msra.mxu0 0.0
        %542 = vmatprep.subr.mxu0 0.0
        %543 = vmatpush1.msra.mxu0 0.0
        %544 = vmatprep.subr.mxu0 0.0
        %545 = vmatpush1.msra.mxu0 0.0
        %546 = vmatprep.subr.mxu0 0.0
        %547 = vmatpush1.msra.mxu0 0.0
        %548 = vmatprep.subr.mxu0 0.0
        %549 = vmatpush1.msra.mxu0 0.0
        %550 = vmatprep.subr.mxu0 0.0
        %551 = vmatpush1.msra.mxu0 0.0
        %552 = vmatprep.subr.mxu0 0.0
        %553 = vmatpush1.msra.mxu0 0.0
        %554 = vmatprep.mubr.f32.mxu0 0.0
        %555 = vmatmul.mubr.f32.gmra.mrb[0].mxu0 %v488
        %v556 = vpop.f32.mrb[0].mxu0
        %v557 = vadd.f32 0.0, %v556
        %v558 = vpop.f32.mrb[0].mxu0
        %v559 = vadd.f32 0.0, %v558
        %560 = vdwg.mxu0
        %v561 = vadd.f32 %v452, %v557
        %v562 = vadd.f32 %v454, %v559
        %563 = vrot.lane.b32.xlu0 %v261, 1
        %v564 = vpop.permute.xlu0 %563
        %565 = vrot.lane.b32.xlu0 %v262, 1
        %v566 = vpop.permute.xlu0 %565
        %vm567 = vcmask 7168
        %v568 = vsel %vm567, %v564, %v566
        %v571 = vsel %vm567, 0.0, %v564
        %v572 = vmul.f32 %v571, %v288
        %v573 = vmul.f32 %v568, %v292
        %s574 = scalar_lea.vmem %s3, 24
        %v575 = vld [vmem:[%s574] sm:$0xff]
        %v577 = vsel %vm307, %v575, 0
        %579 = vmatprep.subr.mxu0 %v573
        %580 = vmatpush1.msra.mxu0 %v572
        %581 = vmatprep.subr.mxu0 0.0
        %582 = vmatpush1.msra.mxu0 0.0
        %583 = vmatprep.subr.mxu0 0.0
        %584 = vmatpush1.msra.mxu0 0.0
        %585 = vmatprep.subr.mxu0 0.0
        %586 = vmatpush1.msra.mxu0 0.0
        %587 = vmatprep.subr.mxu0 0.0
        %588 = vmatpush1.msra.mxu0 0.0
        %589 = vmatprep.subr.mxu0 0.0
        %590 = vmatpush1.msra.mxu0 0.0
        %591 = vmatprep.subr.mxu0 0.0
        %592 = vmatpush1.msra.mxu0 0.0
        %593 = vmatprep.subr.mxu0 0.0
        %594 = vmatpush1.msra.mxu0 0.0
        %595 = vmatprep.subr.mxu0 0.0
        %596 = vmatpush1.msra.mxu0 0.0
        %597 = vmatprep.subr.mxu0 0.0
        %598 = vmatpush1.msra.mxu0 0.0
        %599 = vmatprep.subr.mxu0 0.0
        %600 = vmatpush1.msra.mxu0 0.0
        %601 = vmatprep.subr.mxu0 0.0
        %602 = vmatpush1.msra.mxu0 0.0
        %603 = vmatprep.subr.mxu0 0.0
        %604 = vmatpush1.msra.mxu0 0.0
        %605 = vmatprep.subr.mxu0 0.0
        %606 = vmatpush1.msra.mxu0 0.0
        %607 = vmatprep.subr.mxu0 0.0
        %608 = vmatpush1.msra.mxu0 0.0
        %609 = vmatprep.subr.mxu0 0.0
        %610 = vmatpush1.msra.mxu0 0.0
        %611 = vmatprep.subr.mxu0 0.0
        %612 = vmatpush1.msra.mxu0 0.0
        %613 = vmatprep.subr.mxu0 0.0
        %614 = vmatpush1.msra.mxu0 0.0
        %615 = vmatprep.subr.mxu0 0.0
        %616 = vmatpush1.msra.mxu0 0.0
        %617 = vmatprep.subr.mxu0 0.0
        %618 = vmatpush1.msra.mxu0 0.0
        %619 = vmatprep.subr.mxu0 0.0
        %620 = vmatpush1.msra.mxu0 0.0
        %621 = vmatprep.subr.mxu0 0.0
        %622 = vmatpush1.msra.mxu0 0.0
        %623 = vmatprep.subr.mxu0 0.0
        %624 = vmatpush1.msra.mxu0 0.0
        %625 = vmatprep.subr.mxu0 0.0
        %626 = vmatpush1.msra.mxu0 0.0
        %627 = vmatprep.subr.mxu0 0.0
        %628 = vmatpush1.msra.mxu0 0.0
        %629 = vmatprep.subr.mxu0 0.0
        %630 = vmatpush1.msra.mxu0 0.0
        %631 = vmatprep.subr.mxu0 0.0
        %632 = vmatpush1.msra.mxu0 0.0
        %633 = vmatprep.subr.mxu0 0.0
        %634 = vmatpush1.msra.mxu0 0.0
        %635 = vmatprep.subr.mxu0 0.0
        %636 = vmatpush1.msra.mxu0 0.0
        %637 = vmatprep.subr.mxu0 0.0
        %638 = vmatpush1.msra.mxu0 0.0
        %639 = vmatprep.subr.mxu0 0.0
        %640 = vmatpush1.msra.mxu0 0.0
        %641 = vmatprep.subr.mxu0 0.0
        %642 = vmatpush1.msra.mxu0 0.0
        %643 = vmatprep.mubr.f32.mxu0 0.0
        %644 = vmatmul.mubr.f32.gmra.mrb[0].mxu0 %v577
        %v645 = vpop.f32.mrb[0].mxu0
        %v646 = vadd.f32 0.0, %v645
        %v647 = vpop.f32.mrb[0].mxu0
        %v648 = vadd.f32 0.0, %v647
        %649 = vdwg.mxu0
        %v650 = vadd.f32 %v561, %v646
        %v651 = vadd.f32 %v562, %v648
        %s652 = scalar_lea.vmem %s3, 32
        %v653 = vld [vmem:[%s652] sm:$0xff]
        %v655 = vsel %vm307, %v653, 0
        %657 = vmatprep.subr.mxu0 %v262
        %658 = vmatpush1.msra.mxu0 %v261
        %659 = vmatprep.subr.mxu0 0.0
        %660 = vmatpush1.msra.mxu0 0.0
        %661 = vmatprep.subr.mxu0 0.0
        %662 = vmatpush1.msra.mxu0 0.0
        %663 = vmatprep.subr.mxu0 0.0
        %664 = vmatpush1.msra.mxu0 0.0
        %665 = vmatprep.subr.mxu0 0.0
        %666 = vmatpush1.msra.mxu0 0.0
        %667 = vmatprep.subr.mxu0 0.0
        %668 = vmatpush1.msra.mxu0 0.0
        %669 = vmatprep.subr.mxu0 0.0
        %670 = vmatpush1.msra.mxu0 0.0
        %671 = vmatprep.subr.mxu0 0.0
        %672 = vmatpush1.msra.mxu0 0.0
        %673 = vmatprep.subr.mxu0 0.0
        %674 = vmatpush1.msra.mxu0 0.0
        %675 = vmatprep.subr.mxu0 0.0
        %676 = vmatpush1.msra.mxu0 0.0
        %677 = vmatprep.subr.mxu0 0.0
        %678 = vmatpush1.msra.mxu0 0.0
        %679 = vmatprep.subr.mxu0 0.0
        %680 = vmatpush1.msra.mxu0 0.0
        %681 = vmatprep.subr.mxu0 0.0
        %682 = vmatpush1.msra.mxu0 0.0
        %683 = vmatprep.subr.mxu0 0.0
        %684 = vmatpush1.msra.mxu0 0.0
        %685 = vmatprep.subr.mxu0 0.0
        %686 = vmatpush1.msra.mxu0 0.0
        %687 = vmatprep.subr.mxu0 0.0
        %688 = vmatpush1.msra.mxu0 0.0
        %689 = vmatprep.subr.mxu0 0.0
        %690 = vmatpush1.msra.mxu0 0.0
        %691 = vmatprep.subr.mxu0 0.0
        %692 = vmatpush1.msra.mxu0 0.0
        %693 = vmatprep.subr.mxu0 0.0
        %694 = vmatpush1.msra.mxu0 0.0
        %695 = vmatprep.subr.mxu0 0.0
        %696 = vmatpush1.msra.mxu0 0.0
        %697 = vmatprep.subr.mxu0 0.0
        %698 = vmatpush1.msra.mxu0 0.0
        %699 = vmatprep.subr.mxu0 0.0
        %700 = vmatpush1.msra.mxu0 0.0
        %701 = vmatprep.subr.mxu0 0.0
        %702 = vmatpush1.msra.mxu0 0.0
        %703 = vmatprep.subr.mxu0 0.0
        %704 = vmatpush1.msra.mxu0 0.0
        %705 = vmatprep.subr.mxu0 0.0
        %706 = vmatpush1.msra.mxu0 0.0
        %707 = vmatprep.subr.mxu0 0.0
        %708 = vmatpush1.msra.mxu0 0.0
        %709 = vmatprep.subr.mxu0 0.0
        %710 = vmatpush1.msra.mxu0 0.0
        %711 = vmatprep.subr.mxu0 0.0
        %712 = vmatpush1.msra.mxu0 0.0
        %713 = vmatprep.subr.mxu0 0.0
        %714 = vmatpush1.msra.mxu0 0.0
        %715 = vmatprep.subr.mxu0 0.0
        %716 = vmatpush1.msra.mxu0 0.0
        %717 = vmatprep.subr.mxu0 0.0
        %718 = vmatpush1.msra.mxu0 0.0
        %719 = vmatprep.subr.mxu0 0.0
        %720 = vmatpush1.msra.mxu0 0.0
        %721 = vmatprep.mubr.f32.mxu0 0.0
        %722 = vmatmul.mubr.f32.gmra.mrb[0].mxu0 %v655
        %v723 = vpop.f32.mrb[0].mxu0
        %v724 = vadd.f32 0.0, %v723
        %v725 = vpop.f32.mrb[0].mxu0
        %v726 = vadd.f32 0.0, %v725
        %727 = vdwg.mxu0
        %v728 = vadd.f32 %v650, %v724
        %v729 = vadd.f32 %v651, %v726
        %730 = vrot.lane.b32.xlu0 %v261, 127
        %v731 = vpop.permute.xlu0 %730
        %732 = vrot.lane.b32.xlu0 %v262, 127
        %v733 = vpop.permute.xlu0 %732
        %vm734 = vcmask 1039360
        %v735 = vsel %vm734, %v731, %v733
        %v738 = vsel %vm734, %v733, 0.0
        %v739 = vmul.f32 %v735, %v478
        %v740 = vmul.f32 %v738, %v482
        %s741 = scalar_lea.vmem %s3, 40
        %v742 = vld [vmem:[%s741] sm:$0xff]
        %v744 = vsel %vm307, %v742, 0
        %746 = vmatprep.subr.mxu0 %v740
        %747 = vmatpush1.msra.mxu0 %v739
        %748 = vmatprep.subr.mxu0 0.0
        %749 = vmatpush1.msra.mxu0 0.0
        %750 = vmatprep.subr.mxu0 0.0
        %751 = vmatpush1.msra.mxu0 0.0
        %752 = vmatprep.subr.mxu0 0.0
        %753 = vmatpush1.msra.mxu0 0.0
        %754 = vmatprep.subr.mxu0 0.0
        %755 = vmatpush1.msra.mxu0 0.0
        %756 = vmatprep.subr.mxu0 0.0
        %757 = vmatpush1.msra.mxu0 0.0
        %758 = vmatprep.subr.mxu0 0.0
        %759 = vmatpush1.msra.mxu0 0.0
        %760 = vmatprep.subr.mxu0 0.0
        %761 = vmatpush1.msra.mxu0 0.0
        %762 = vmatprep.subr.mxu0 0.0
        %763 = vmatpush1.msra.mxu0 0.0
        %764 = vmatprep.subr.mxu0 0.0
        %765 = vmatpush1.msra.mxu0 0.0
        %766 = vmatprep.subr.mxu0 0.0
        %767 = vmatpush1.msra.mxu0 0.0
        %768 = vmatprep.subr.mxu0 0.0
        %769 = vmatpush1.msra.mxu0 0.0
        %770 = vmatprep.subr.mxu0 0.0
        %771 = vmatpush1.msra.mxu0 0.0
        %772 = vmatprep.subr.mxu0 0.0
        %773 = vmatpush1.msra.mxu0 0.0
        %774 = vmatprep.subr.mxu0 0.0
        %775 = vmatpush1.msra.mxu0 0.0
        %776 = vmatprep.subr.mxu0 0.0
        %777 = vmatpush1.msra.mxu0 0.0
        %778 = vmatprep.subr.mxu0 0.0
        %779 = vmatpush1.msra.mxu0 0.0
        %780 = vmatprep.subr.mxu0 0.0
        %781 = vmatpush1.msra.mxu0 0.0
        %782 = vmatprep.subr.mxu0 0.0
        %783 = vmatpush1.msra.mxu0 0.0
        %784 = vmatprep.subr.mxu0 0.0
        %785 = vmatpush1.msra.mxu0 0.0
        %786 = vmatprep.subr.mxu0 0.0
        %787 = vmatpush1.msra.mxu0 0.0
        %788 = vmatprep.subr.mxu0 0.0
        %789 = vmatpush1.msra.mxu0 0.0
        %790 = vmatprep.subr.mxu0 0.0
        %791 = vmatpush1.msra.mxu0 0.0
        %792 = vmatprep.subr.mxu0 0.0
        %793 = vmatpush1.msra.mxu0 0.0
        %794 = vmatprep.subr.mxu0 0.0
        %795 = vmatpush1.msra.mxu0 0.0
        %796 = vmatprep.subr.mxu0 0.0
        %797 = vmatpush1.msra.mxu0 0.0
        %798 = vmatprep.subr.mxu0 0.0
        %799 = vmatpush1.msra.mxu0 0.0
        %800 = vmatprep.subr.mxu0 0.0
        %801 = vmatpush1.msra.mxu0 0.0
        %802 = vmatprep.subr.mxu0 0.0
        %803 = vmatpush1.msra.mxu0 0.0
        %804 = vmatprep.subr.mxu0 0.0
        %805 = vmatpush1.msra.mxu0 0.0
        %806 = vmatprep.subr.mxu0 0.0
        %807 = vmatpush1.msra.mxu0 0.0
        %808 = vmatprep.subr.mxu0 0.0
        %809 = vmatpush1.msra.mxu0 0.0
        %810 = vmatprep.mubr.f32.mxu0 0.0
        %811 = vmatmul.mubr.f32.gmra.mrb[0].mxu0 %v744
        %v812 = vpop.f32.mrb[0].mxu0
        %v813 = vadd.f32 0.0, %v812
        %v814 = vpop.f32.mrb[0].mxu0
        %v815 = vadd.f32 0.0, %v814
        %816 = vdwg.mxu0
        %v817 = vadd.f32 %v728, %v813
        %v818 = vadd.f32 %v729, %v815
        %819 = vrot.lane.b32.xlu0 %v261, 113
        %v820 = vpop.permute.xlu0 %819
        %821 = vrot.lane.b32.xlu0 %v262, 113
        %v822 = vpop.permute.xlu0 %821
        %vm823 = vcmask 924672
        %v824 = vsel %vm823, %v820, %v822
        %v827 = vsel %vm823, %v822, 0.0
        %v828 = vmul.f32 %v824, %v288
        %v829 = vmul.f32 %v827, %v292
        %s830 = scalar_lea.vmem %s3, 48
        %v831 = vld [vmem:[%s830] sm:$0xff]
        %v833 = vsel %vm307, %v831, 0
        %835 = vmatprep.subr.mxu0 %v829
        %836 = vmatpush1.msra.mxu0 %v828
        %837 = vmatprep.subr.mxu0 0.0
        %838 = vmatpush1.msra.mxu0 0.0
        %839 = vmatprep.subr.mxu0 0.0
        %840 = vmatpush1.msra.mxu0 0.0
        %841 = vmatprep.subr.mxu0 0.0
        %842 = vmatpush1.msra.mxu0 0.0
        %843 = vmatprep.subr.mxu0 0.0
        %844 = vmatpush1.msra.mxu0 0.0
        %845 = vmatprep.subr.mxu0 0.0
        %846 = vmatpush1.msra.mxu0 0.0
        %847 = vmatprep.subr.mxu0 0.0
        %848 = vmatpush1.msra.mxu0 0.0
        %849 = vmatprep.subr.mxu0 0.0
        %850 = vmatpush1.msra.mxu0 0.0
        %851 = vmatprep.subr.mxu0 0.0
        %852 = vmatpush1.msra.mxu0 0.0
        %853 = vmatprep.subr.mxu0 0.0
        %854 = vmatpush1.msra.mxu0 0.0
        %855 = vmatprep.subr.mxu0 0.0
        %856 = vmatpush1.msra.mxu0 0.0
        %857 = vmatprep.subr.mxu0 0.0
        %858 = vmatpush1.msra.mxu0 0.0
        %859 = vmatprep.subr.mxu0 0.0
        %860 = vmatpush1.msra.mxu0 0.0
        %861 = vmatprep.subr.mxu0 0.0
        %862 = vmatpush1.msra.mxu0 0.0
        %863 = vmatprep.subr.mxu0 0.0
        %864 = vmatpush1.msra.mxu0 0.0
        %865 = vmatprep.subr.mxu0 0.0
        %866 = vmatpush1.msra.mxu0 0.0
        %867 = vmatprep.subr.mxu0 0.0
        %868 = vmatpush1.msra.mxu0 0.0
        %869 = vmatprep.subr.mxu0 0.0
        %870 = vmatpush1.msra.mxu0 0.0
        %871 = vmatprep.subr.mxu0 0.0
        %872 = vmatpush1.msra.mxu0 0.0
        %873 = vmatprep.subr.mxu0 0.0
        %874 = vmatpush1.msra.mxu0 0.0
        %875 = vmatprep.subr.mxu0 0.0
        %876 = vmatpush1.msra.mxu0 0.0
        %877 = vmatprep.subr.mxu0 0.0
        %878 = vmatpush1.msra.mxu0 0.0
        %879 = vmatprep.subr.mxu0 0.0
        %880 = vmatpush1.msra.mxu0 0.0
        %881 = vmatprep.subr.mxu0 0.0
        %882 = vmatpush1.msra.mxu0 0.0
        %883 = vmatprep.subr.mxu0 0.0
        %884 = vmatpush1.msra.mxu0 0.0
        %885 = vmatprep.subr.mxu0 0.0
        %886 = vmatpush1.msra.mxu0 0.0
        %887 = vmatprep.subr.mxu0 0.0
        %888 = vmatpush1.msra.mxu0 0.0
        %889 = vmatprep.subr.mxu0 0.0
        %890 = vmatpush1.msra.mxu0 0.0
        %891 = vmatprep.subr.mxu0 0.0
        %892 = vmatpush1.msra.mxu0 0.0
        %893 = vmatprep.subr.mxu0 0.0
        %894 = vmatpush1.msra.mxu0 0.0
        %895 = vmatprep.subr.mxu0 0.0
        %896 = vmatpush1.msra.mxu0 0.0
        %897 = vmatprep.subr.mxu0 0.0
        %898 = vmatpush1.msra.mxu0 0.0
        %899 = vmatprep.mubr.f32.mxu0 0.0
        %900 = vmatmul.mubr.f32.gmra.mrb[0].mxu0 %v833
        %v901 = vpop.f32.mrb[0].mxu0
        %v902 = vadd.f32 0.0, %v901
        %v903 = vpop.f32.mrb[0].mxu0
        %v904 = vadd.f32 0.0, %v903
        %905 = vdwg.mxu0
        %v906 = vadd.f32 %v817, %v902
        %v907 = vadd.f32 %v818, %v904
        %908 = vrot.lane.b32.xlu0 %v261, 112
        %v909 = vpop.permute.xlu0 %908
        %910 = vrot.lane.b32.xlu0 %v262, 112
        %v911 = vpop.permute.xlu0 %910
        %vm912 = vcmask 916480
        %v913 = vsel %vm912, %v909, %v911
        %v916 = vsel %vm912, %v911, 0.0
        %s917 = scalar_lea.vmem %s3, 56
        %v918 = vld [vmem:[%s917] sm:$0xff]
        %v920 = vsel %vm307, %v918, 0
        %922 = vmatprep.subr.mxu0 %v916
        %923 = vmatpush1.msra.mxu0 %v913
        %924 = vmatprep.subr.mxu0 0.0
        %925 = vmatpush1.msra.mxu0 0.0
        %926 = vmatprep.subr.mxu0 0.0
        %927 = vmatpush1.msra.mxu0 0.0
        %928 = vmatprep.subr.mxu0 0.0
        %929 = vmatpush1.msra.mxu0 0.0
        %930 = vmatprep.subr.mxu0 0.0
        %931 = vmatpush1.msra.mxu0 0.0
        %932 = vmatprep.subr.mxu0 0.0
        %933 = vmatpush1.msra.mxu0 0.0
        %934 = vmatprep.subr.mxu0 0.0
        %935 = vmatpush1.msra.mxu0 0.0
        %936 = vmatprep.subr.mxu0 0.0
        %937 = vmatpush1.msra.mxu0 0.0
        %938 = vmatprep.subr.mxu0 0.0
        %939 = vmatpush1.msra.mxu0 0.0
        %940 = vmatprep.subr.mxu0 0.0
        %941 = vmatpush1.msra.mxu0 0.0
        %942 = vmatprep.subr.mxu0 0.0
        %943 = vmatpush1.msra.mxu0 0.0
        %944 = vmatprep.subr.mxu0 0.0
        %945 = vmatpush1.msra.mxu0 0.0
        %946 = vmatprep.subr.mxu0 0.0
        %947 = vmatpush1.msra.mxu0 0.0
        %948 = vmatprep.subr.mxu0 0.0
        %949 = vmatpush1.msra.mxu0 0.0
        %950 = vmatprep.subr.mxu0 0.0
        %951 = vmatpush1.msra.mxu0 0.0
        %952 = vmatprep.subr.mxu0 0.0
        %953 = vmatpush1.msra.mxu0 0.0
        %954 = vmatprep.subr.mxu0 0.0
        %955 = vmatpush1.msra.mxu0 0.0
        %956 = vmatprep.subr.mxu0 0.0
        %957 = vmatpush1.msra.mxu0 0.0
        %958 = vmatprep.subr.mxu0 0.0
        %959 = vmatpush1.msra.mxu0 0.0
        %960 = vmatprep.subr.mxu0 0.0
        %961 = vmatpush1.msra.mxu0 0.0
        %962 = vmatprep.subr.mxu0 0.0
        %963 = vmatpush1.msra.mxu0 0.0
        %964 = vmatprep.subr.mxu0 0.0
        %965 = vmatpush1.msra.mxu0 0.0
        %966 = vmatprep.subr.mxu0 0.0
        %967 = vmatpush1.msra.mxu0 0.0
        %968 = vmatprep.subr.mxu0 0.0
        %969 = vmatpush1.msra.mxu0 0.0
        %970 = vmatprep.subr.mxu0 0.0
        %971 = vmatpush1.msra.mxu0 0.0
        %972 = vmatprep.subr.mxu0 0.0
        %973 = vmatpush1.msra.mxu0 0.0
        %974 = vmatprep.subr.mxu0 0.0
        %975 = vmatpush1.msra.mxu0 0.0
        %976 = vmatprep.subr.mxu0 0.0
        %977 = vmatpush1.msra.mxu0 0.0
        %978 = vmatprep.subr.mxu0 0.0
        %979 = vmatpush1.msra.mxu0 0.0
        %980 = vmatprep.subr.mxu0 0.0
        %981 = vmatpush1.msra.mxu0 0.0
        %982 = vmatprep.subr.mxu0 0.0
        %983 = vmatpush1.msra.mxu0 0.0
        %984 = vmatprep.subr.mxu0 0.0
        %985 = vmatpush1.msra.mxu0 0.0
        %986 = vmatprep.mubr.f32.mxu0 0.0
        %987 = vmatmul.mubr.f32.gmra.mrb[0].mxu0 %v920
        %v988 = vpop.f32.mrb[0].mxu0
        %v989 = vadd.f32 0.0, %v988
        %v990 = vpop.f32.mrb[0].mxu0
        %v991 = vadd.f32 0.0, %v990
        %992 = vdwg.mxu0
        %v993 = vadd.f32 %v906, %v989
        %v994 = vadd.f32 %v907, %v991
        %995 = vrot.lane.b32.xlu0 %v261, 111
        %v996 = vpop.permute.xlu0 %995
        %997 = vrot.lane.b32.xlu0 %v262, 111
        %v998 = vpop.permute.xlu0 %997
        %vm999 = vcmask 908288
        %v1000 = vsel %vm999, %v996, %v998
        %v1003 = vsel %vm999, %v998, 0.0
        %v1004 = vmul.f32 %v1000, %v478
        %v1005 = vmul.f32 %v1003, %v482
        %s1006 = scalar_lea.vmem %s3, 64
        %v1007 = vld [vmem:[%s1006] sm:$0xff]
        %v1009 = vsel %vm307, %v1007, 0
        %1011 = vmatprep.subr.mxu0 %v1005
        %1012 = vmatpush1.msra.mxu0 %v1004
        %1013 = vmatprep.subr.mxu0 0.0
        %1014 = vmatpush1.msra.mxu0 0.0
        %1015 = vmatprep.subr.mxu0 0.0
        %1016 = vmatpush1.msra.mxu0 0.0
        %1017 = vmatprep.subr.mxu0 0.0
        %1018 = vmatpush1.msra.mxu0 0.0
        %1019 = vmatprep.subr.mxu0 0.0
        %1020 = vmatpush1.msra.mxu0 0.0
        %1021 = vmatprep.subr.mxu0 0.0
        %1022 = vmatpush1.msra.mxu0 0.0
        %1023 = vmatprep.subr.mxu0 0.0
        %1024 = vmatpush1.msra.mxu0 0.0
        %1025 = vmatprep.subr.mxu0 0.0
        %1026 = vmatpush1.msra.mxu0 0.0
        %1027 = vmatprep.subr.mxu0 0.0
        %1028 = vmatpush1.msra.mxu0 0.0
        %1029 = vmatprep.subr.mxu0 0.0
        %1030 = vmatpush1.msra.mxu0 0.0
        %1031 = vmatprep.subr.mxu0 0.0
        %1032 = vmatpush1.msra.mxu0 0.0
        %1033 = vmatprep.subr.mxu0 0.0
        %1034 = vmatpush1.msra.mxu0 0.0
        %1035 = vmatprep.subr.mxu0 0.0
        %1036 = vmatpush1.msra.mxu0 0.0
        %1037 = vmatprep.subr.mxu0 0.0
        %1038 = vmatpush1.msra.mxu0 0.0
        %1039 = vmatprep.subr.mxu0 0.0
        %1040 = vmatpush1.msra.mxu0 0.0
        %1041 = vmatprep.subr.mxu0 0.0
        %1042 = vmatpush1.msra.mxu0 0.0
        %1043 = vmatprep.subr.mxu0 0.0
        %1044 = vmatpush1.msra.mxu0 0.0
        %1045 = vmatprep.subr.mxu0 0.0
        %1046 = vmatpush1.msra.mxu0 0.0
        %1047 = vmatprep.subr.mxu0 0.0
        %1048 = vmatpush1.msra.mxu0 0.0
        %1049 = vmatprep.subr.mxu0 0.0
        %1050 = vmatpush1.msra.mxu0 0.0
        %1051 = vmatprep.subr.mxu0 0.0
        %1052 = vmatpush1.msra.mxu0 0.0
        %1053 = vmatprep.subr.mxu0 0.0
        %1054 = vmatpush1.msra.mxu0 0.0
        %1055 = vmatprep.subr.mxu0 0.0
        %1056 = vmatpush1.msra.mxu0 0.0
        %1057 = vmatprep.subr.mxu0 0.0
        %1058 = vmatpush1.msra.mxu0 0.0
        %1059 = vmatprep.subr.mxu0 0.0
        %1060 = vmatpush1.msra.mxu0 0.0
        %1061 = vmatprep.subr.mxu0 0.0
        %1062 = vmatpush1.msra.mxu0 0.0
        %1063 = vmatprep.subr.mxu0 0.0
        %1064 = vmatpush1.msra.mxu0 0.0
        %1065 = vmatprep.subr.mxu0 0.0
        %1066 = vmatpush1.msra.mxu0 0.0
        %1067 = vmatprep.subr.mxu0 0.0
        %1068 = vmatpush1.msra.mxu0 0.0
        %1069 = vmatprep.subr.mxu0 0.0
        %1070 = vmatpush1.msra.mxu0 0.0
        %1071 = vmatprep.subr.mxu0 0.0
        %1072 = vmatpush1.msra.mxu0 0.0
        %1073 = vmatprep.subr.mxu0 0.0
        %1074 = vmatpush1.msra.mxu0 0.0
        %1075 = vmatprep.mubr.f32.mxu0 0.0
        %1076 = vmatmul.mubr.f32.gmra.mrb[0].mxu0 %v1009
        %v1077 = vpop.f32.mrb[0].mxu0
        %v1078 = vadd.f32 0.0, %v1077
        %v1079 = vpop.f32.mrb[0].mxu0
        %v1080 = vadd.f32 0.0, %v1079
        %1081 = vdwg.mxu0
        %v1082 = vadd.f32 %v993, %v1078
        %v1083 = vadd.f32 %v994, %v1080
        %v1084 = vld [vmem:[%s4] sm:$0xff]
        %1086 = vset.pattern.permute.xlu0 0
        %1087 = vperm.xlu0 %1086, %v1084
        %v1088 = vpop.permute.xlu0 %1087
        %v1090 = vadd.f32 %v1082, %v1088
        %v1091 = vadd.f32 %v1083, %v1088
        %v1092 = vsub.f32 0.0, %v1090
        %v1093 = vsub.f32 0.0, %v1091
        %v1094 = vmul.f32 %v1092, 1.442695
        %v1095 = vpow.pop %v1094
        %v1096 = vmul.f32 %v1093, 1.442695
        %v1097 = vpow.pop %v1096
        %v1098 = vadd.f32 %v1095, 1.0
        %v1099 = vadd.f32 %v1097, 1.0
        %v1100 = vrcp.pop %v1098
        %v1101 = vmul.f32 1.0, %v1100
        %v1102 = vrcp.pop %v1099
        %v1103 = vmul.f32 1.0, %v1102
        %v1106 = vrot.slane %v1101, 4
        %v1107 = vrot.slane %v1103, 4
        %v1110 = vmul.f32 %v1090, %v1106
        %v1111 = vmul.f32 %v1091, %v1107
        %v1114 = vcombine.low %v1110, %v1111
        %1116 = vst [vmem:[%s231] sm:$0xff] %v1114
        %s1117 = sand.u32 %s138, 1
        %s1118 = scalar_lea.sflag [#allocation3], %s1117
        %s1119 = sand.u32 %s138, 1
        %s1120 = smul.addr %s1119, 8
        %s1121 = scalar_lea.vmem [#allocation5], %s1120
        // Predicated region
        $region45: #{tpu_custom_call.1} parent=39 // pred_check
          %p1122 = pneg %p148
        $region46: #{tpu_custom_call.1} parent=39 // pred_check_branch
          %1124 = sbr.rel (%p1122) target = $region48
        $region47: #{tpu_custom_call.1} parent=39 // pred_region
          %s1126 = ssub.s32 128, 128
          %1127 = vsyncadd %s1118, %s1126
          %s1128 = smul.addr %s20, 2
          %s1129 = smul.addr %s1128, 64
          %s1130 = scalar_lea.hbm %s5, %s1129
          %s1132 = sshll.u32 %s1121, 4
          %s1133 = int_to_ptr.vmem [resolvable:$true] %s1132
          %1135 = dma.vmem_to_hbm [thread:$0]  %s1133, 128, %s1130, %s1118
        $region48: #{tpu_custom_call.1} parent=39 // pred_fallthru
          _
      $region40: #{tpu_custom_call.1} parent=5 // pred_fallthru
        _
      %p1136 = scmp.le.s32.totalorder 2, %s15
      // Predicated region
      $region49: #{tpu_custom_call.1} parent=5 // pred_check
        %p1137 = pneg %p1136
      $region50: #{tpu_custom_call.1} parent=5 // pred_check_branch
        %1139 = sbr.rel (%p1137) target = $region52
      $region51: #{tpu_custom_call.1} parent=5 // pred_region
        %s1140 = ssub.s32 %s15, 2
        // Predicated region
        $region53: #{tpu_custom_call.1} parent=51 // pred_check
          %p1141 = pneg %p154
        $region54: #{tpu_custom_call.1} parent=51 // pred_check_branch
          %1143 = sbr.rel (%p1141) target = $region56
        $region55: #{tpu_custom_call.1} parent=51 // pred_region
          %s1144 = sand.u32 %s139, 1
          %s1145 = scalar_lea.sflag [#allocation3], %s1144
          %s1146 = sand.u32 %s139, 1
          %s1147 = smul.addr %s1146, 8
          %s1148 = scalar_lea.vmem [#allocation5], %s1147
          %1149 = dma.done %s1145, 128
        $region56: #{tpu_custom_call.1} parent=51 // pred_fallthru
          _
      $region52: #{tpu_custom_call.1} parent=5 // pred_fallthru
        _
    $region6: #{tpu_custom_call.1} parent=1 // loop_footer
      %s19 = sadd.s32 1, %s15
    $region7: #{tpu_custom_call.1} parent=1 // loop_footer_branch
      %14 = sbr.rel target = $region3
    $region8: #{tpu_custom_call.1} parent=1 // loop_exit
      _
    %1150 = vsyncpa [#allocation3], 1
    %s1151 = scalar_lea.sflag [#allocation3], 1
    %1152 = vsyncpa %s1151, 1
    %1153 = vsyncpa [#allocation4], 1
    %s1154 = scalar_lea.sflag [#allocation4], 1
    %1155 = vsyncpa %s1154, 1

</llo_original>
